<compile_context>
chip_gen: v7x
topology: tpu7x:2x2x1
jax: 0.10.0
libtpu: 0.0.40
codegen_flags: <defaults>
</compile_context>

<pallas_src>
import functools

import jax
import jax.numpy as jnp
from jax.experimental import pallas as pl
from jax.experimental.pallas import tpu as pltpu


def _round_up(n, m):
    return ((n + m - 1) // m) * m


def _mlp_kernel(n_stacked, compute_dtype, *refs):
    """One batch tile through the whole fused MLP.

    refs layout:
      [0]                       x_ref      (TB, F)        compute_dtype
      [1 : 1+n_stacked]         w_refs[j]  (Kpad_j, Npad_j) compute_dtype
      [1+n_stacked]             w_head_ref (1, Klast_pad) f32
      [2+n_stacked : 2+2n]      s_refs[j]  (1, Npad_j)    f32
      [2+2n]                    s_head_ref (1, 1)         f32
      [3+2n]                    out_ref    (1, TB)        f32
    """
    x_ref = refs[0]
    w_refs = refs[1:1 + n_stacked]
    w_head_ref = refs[1 + n_stacked]
    s_refs = refs[2 + n_stacked:2 + 2 * n_stacked]
    s_head_ref = refs[2 + 2 * n_stacked]
    out_ref = refs[3 + 2 * n_stacked]

    # Linear (+ folded bias/BN) + ReLU stack. Dropout = identity (eval mode).
    h = x_ref[...]
    for j in range(n_stacked):
        z = jnp.dot(h.astype(compute_dtype), w_refs[j][...],
                    preferred_element_type=jnp.float32)
        h = jnp.maximum(z + s_refs[j][...], 0.0)          # f32 activations

    # Head: (ub - lb) scaling / lb offset already folded into row + shift.
    # Transpose the (TB, Klast_pad) activation once (XLU) so the thin head
    # matmul directly produces batch-in-lanes (1, TB) logits.
    h_t = jnp.transpose(h)                                 # (Klast_pad, TB)
    logit = jnp.dot(w_head_ref[...], h_t,
                    preferred_element_type=jnp.float32)    # (1, TB)
    out_ref[...] = jax.nn.sigmoid(logit + s_head_ref[...])


def prepare_fused_params(params, lower_bound, upper_bound, compute_dtype):
    """Fold bias + BN (and head range scaling) into weights; pad per layer."""
    w0, b0, s0, t0 = params["calibrate"]
    hidden = params["hidden"]
    wl, bl = params["last"]

    def fold_bn(w, b, s, t):
        return w * s, b * s + t

    layers = [fold_bn(w0, b0, s0, t0)]
    for (w, b, s, t) in hidden:
        layers.append(fold_bn(w, b, s, t))

    ws, shifts = [], []
    for idx, (w, sh) in enumerate(layers):
        k, n = w.shape
        npad = _round_up(n, 128)
        # K of layer j equals the padded N of layer j-1 (activations are
        # zero-padded there); the first layer keeps the true feature width F.
        kpad = k if idx == 0 else _round_up(k, 128)
        ws.append(jnp.pad(w, ((0, kpad - k), (0, npad - n))).astype(compute_dtype))
        shifts.append(jnp.pad(sh, ((0, 0), (0, npad - n))).astype(jnp.float32))

    # Head row (out_features=1): fold the sigmoid-range scaling; keep f32
    # (tiny, and the head matmul is a single thin pass).
    scale = float(upper_bound - lower_bound)
    klast = wl.shape[0]
    klast_pad = _round_up(klast, 128)
    w_head = jnp.pad((wl * scale).T,
                     ((0, 0), (0, klast_pad - klast))).astype(jnp.float32)
    s_head = (bl * scale + float(lower_bound)).reshape(1, 1).astype(jnp.float32)

    return ws, shifts, w_head, s_head


def deepstack_mlp_forward(x, params, lower_bound=0.0, upper_bound=10.5,
                          compute_dtype=jnp.bfloat16, block_batch=1024):
    """x: [B, len_cat + len_num] float32. Returns [B, 1] float32 probabilities."""
    B, F = x.shape
    ws, shifts, w_head, s_head = prepare_fused_params(
        params, lower_bound, upper_bound, compute_dtype)
    n_stacked = len(ws)

    # Batch tile: multiple of 128 so the (1, TB) output stores stay lane-dense.
    b128 = _round_up(B, 128)
    tb = min(_round_up(block_batch, 128), b128)
    if tb >= b128 and B > 128:
        # Whole batch fits in one tile: split in two so both v7x TensorCores
        # (megacore 'parallel' axis) get work.
        tb = _round_up(pl.cdiv(B, 2), 128)
    num_tiles = pl.cdiv(B, tb)
    b_pad = num_tiles * tb

    # Feed the matmul dtype straight from HBM (halves x read on the bf16 path).
    x_p = x.astype(compute_dtype)
    if b_pad != B:
        x_p = jnp.pad(x_p, ((0, b_pad - B), (0, 0)))

    kernel = functools.partial(_mlp_kernel, n_stacked, compute_dtype)

    in_specs = [pl.BlockSpec((tb, F), lambda i: (i, 0))]               # pipelined
    in_specs += [pl.BlockSpec(w.shape, lambda i: (0, 0)) for w in ws]  # resident
    in_specs += [pl.BlockSpec(w_head.shape, lambda i: (0, 0))]
    in_specs += [pl.BlockSpec(s.shape, lambda i: (0, 0)) for s in shifts]
    in_specs += [pl.BlockSpec(s_head.shape, lambda i: (0, 0))]

    flops = 2 * b_pad * (sum(int(w.shape[0]) * int(w.shape[1]) for w in ws)
                         + int(w_head.shape[1]))
    bytes_accessed = (x_p.size * x_p.dtype.itemsize
                      + sum(int(w.size) * w.dtype.itemsize for w in ws)
                      + sum(int(s.size) * 4 for s in shifts)
                      + int(w_head.size) * 4 + 4
                      + b_pad * 4)
    cost = pl.CostEstimate(flops=int(flops), transcendentals=int(b_pad),
                           bytes_accessed=int(bytes_accessed))

    out = pl.pallas_call(
        kernel,
        out_shape=jax.ShapeDtypeStruct((1, b_pad), jnp.float32),
        grid=(num_tiles,),
        in_specs=in_specs,
        out_specs=pl.BlockSpec((1, tb), lambda i: (0, i)),   # lane-dense row
        compiler_params=pltpu.CompilerParams(
            dimension_semantics=("parallel",)),
        cost_estimate=cost,
    )(x_p, *ws, w_head, *shifts, s_head)

    return out[0, :B].reshape(B, 1)


def init_params(key, len_total, hidden_size_list):
    """Deterministic synthetic parameters. Linear weights stored as (in, out).

    BatchNorm1d (eval) as: scale = gamma / sqrt(running_var + eps),
    shift = beta - running_mean * scale.
    """
    eps = 1e-5

    def linear(key, fan_in, fan_out):
        kw, kb = jax.random.split(key)
        bound = 1.0 / jnp.sqrt(fan_in)
        w = jax.random.uniform(kw, (fan_in, fan_out), jnp.float32, -bound, bound)
        b = jax.random.uniform(kb, (1, fan_out), jnp.float32, -bound, bound)
        return w, b

    def bn(key, n):
        kg, kb, km, kv = jax.random.split(key, 4)
        gamma = 1.0 + 0.1 * jax.random.normal(kg, (1, n), jnp.float32)
        beta = 0.1 * jax.random.normal(kb, (1, n), jnp.float32)
        running_mean = 0.1 * jax.random.normal(km, (1, n), jnp.float32)
        running_var = jnp.abs(1.0 + 0.1 * jax.random.normal(kv, (1, n), jnp.float32))
        scale = gamma / jnp.sqrt(running_var + eps)
        shift = beta - running_mean * scale
        return scale, shift

    dims = [len_total] + list(hidden_size_list)
    keys = jax.random.split(key, 2 * len(hidden_size_list) + 1)

    w0, b0 = linear(keys[0], dims[0], dims[1])
    s0, t0 = bn(keys[1], dims[1])
    calibrate = (w0, b0, s0, t0)

    hidden = []
    kidx = 2
    for prev, cur in zip(hidden_size_list[:-1], hidden_size_list[1:]):
        w, b = linear(keys[kidx], prev, cur)
        s, t = bn(keys[kidx + 1], cur)
        kidx += 2
        hidden.append((w, b, s, t))

    wl, bl = linear(keys[kidx], hidden_size_list[-1], 1)
    last = (wl, bl)

    return {"calibrate": calibrate, "hidden": hidden, "last": last}


def reference_forward(x, params, lower_bound=0.0, upper_bound=10.5):
    hp = jax.lax.Precision.HIGHEST
    h = x.astype(jnp.float32)
    for (w, b, s, t) in [params["calibrate"]] + params["hidden"]:
        h = jnp.maximum((jnp.dot(h, w, precision=hp) + b) * s + t, 0.0)
    wl, bl = params["last"]
    logit = jnp.dot(h, wl, precision=hp) + bl
    return jax.nn.sigmoid(logit * (upper_bound - lower_bound) + lower_bound)


if __name__ == "__main__":
    len_cat, len_num = 3, 5
    hidden_size_list = [32, 16]
    batch = 8
    lower_bound, upper_bound = 0.0, 10.5

    key = jax.random.PRNGKey(0)
    kx, kp = jax.random.split(key)
    x = jax.random.normal(kx, (batch, len_cat + len_num), jnp.float32)
    params = init_params(kp, len_cat + len_num, hidden_size_list)

    ref = reference_forward(x, params, lower_bound, upper_bound)

    # Exact-semantics check with f32 matmuls.
    out_f32 = deepstack_mlp_forward(x, params, lower_bound, upper_bound,
                                    compute_dtype=jnp.float32)
    out_f32 = jax.block_until_ready(out_f32)
    assert out_f32.shape == (batch, 1)
    assert jnp.allclose(out_f32, ref, atol=1e-4, rtol=1e-4), (out_f32, ref)

    # Fast path: bf16 MXU inputs (fed from the wrapper), f32 accumulation.
    out_bf16 = deepstack_mlp_forward(x, params, lower_bound, upper_bound,
                                     compute_dtype=jnp.bfloat16)
    out_bf16 = jax.block_until_ready(out_bf16)
    assert out_bf16.shape == (batch, 1)
    assert jnp.allclose(out_bf16, ref, atol=5e-2), (out_bf16, ref)

    print("KERNEL_OK")
</pallas_src>

<mosaic_0001>
module attributes {stable_mosaic.version = 11 : i64} {
  func.func @_mlp_kernel(%arg0: i32, %arg1: memref<128x8xf32, #tpu.memory_space<vmem>>, %arg2: memref<8x128xf32, #tpu.memory_space<vmem>>, %arg3: memref<128x128xf32, #tpu.memory_space<vmem>>, %arg4: memref<1x128xf32, #tpu.memory_space<vmem>>, %arg5: memref<1x128xf32, #tpu.memory_space<vmem>>, %arg6: memref<1x128xf32, #tpu.memory_space<vmem>>, %arg7: memref<1x1xf32, #tpu.memory_space<vmem>>, %arg8: memref<1x128xf32, #tpu.memory_space<vmem>>) attributes {dimension_semantics = [#tpu.dimension_semantics<parallel>], iteration_bounds = array<i64: 1>, scalar_prefetch = 0 : i64, scratch_operands = 0 : i64, tpu.core_type = #tpu.core_type<tc>, window_params = [{transform_indices = @transform_0, window_bounds = array<i64: 128, 8>}, {pipeline_mode = #tpu.pipeline_mode<synchronous>, transform_indices = @transform_1, window_bounds = array<i64: 8, 128>}, {pipeline_mode = #tpu.pipeline_mode<synchronous>, transform_indices = @transform_2, window_bounds = array<i64: 128, 128>}, {pipeline_mode = #tpu.pipeline_mode<synchronous>, transform_indices = @transform_3, window_bounds = array<i64: 1, 128>}, {pipeline_mode = #tpu.pipeline_mode<synchronous>, transform_indices = @transform_4, window_bounds = array<i64: 1, 128>}, {pipeline_mode = #tpu.pipeline_mode<synchronous>, transform_indices = @transform_5, window_bounds = array<i64: 1, 128>}, {pipeline_mode = #tpu.pipeline_mode<synchronous>, transform_indices = @transform_6, window_bounds = array<i64: 1, 1>}, {transform_indices = @transform_7, window_bounds = array<i64: 1, 128>}]} {
    %c0 = arith.constant 0 : index
    %c0_0 = arith.constant 0 : index
    %0 = vector.load %arg1[%c0, %c0_0] : memref<128x8xf32, #tpu.memory_space<vmem>>, vector<128x8xf32>
    %c0_1 = arith.constant 0 : index
    %c0_2 = arith.constant 0 : index
    %1 = vector.load %arg2[%c0_1, %c0_2] : memref<8x128xf32, #tpu.memory_space<vmem>>, vector<8x128xf32>
    %cst = arith.constant dense<0.000000e+00> : vector<128x128xf32>
    %2 = tpu.matmul %0, %1, %cst {dimension_numbers = #tpu.dot_dimension_numbers<[1], [0], [0], [1], [0, 0, 1, 1], [], []>} : vector<128x8xf32>, vector<8x128xf32>, vector<128x128xf32> -> vector<128x128xf32>
    %c0_3 = arith.constant 0 : index
    %c0_4 = arith.constant 0 : index
    %3 = vector.load %arg5[%c0_3, %c0_4] : memref<1x128xf32, #tpu.memory_space<vmem>>, vector<1x128xf32>
    %4 = vector.broadcast %3 : vector<1x128xf32> to vector<128x128xf32>
    %5 = arith.addf %2, %4 : vector<128x128xf32>
    %cst_5 = arith.constant 0.000000e+00 : f32
    %6 = vector.broadcast %cst_5 : f32 to vector<128x128xf32>
    %7 = arith.maximumf %5, %6 : vector<128x128xf32>
    %c0_6 = arith.constant 0 : index
    %c0_7 = arith.constant 0 : index
    %8 = vector.load %arg3[%c0_6, %c0_7] : memref<128x128xf32, #tpu.memory_space<vmem>>, vector<128x128xf32>
    %cst_8 = arith.constant dense<0.000000e+00> : vector<128x128xf32>
    %9 = tpu.matmul %7, %8, %cst_8 {dimension_numbers = #tpu.dot_dimension_numbers<[1], [0], [0], [1], [0, 0, 1, 1], [], []>} : vector<128x128xf32>, vector<128x128xf32>, vector<128x128xf32> -> vector<128x128xf32>
    %c0_9 = arith.constant 0 : index
    %c0_10 = arith.constant 0 : index
    %10 = vector.load %arg6[%c0_9, %c0_10] : memref<1x128xf32, #tpu.memory_space<vmem>>, vector<1x128xf32>
    %11 = vector.broadcast %10 : vector<1x128xf32> to vector<128x128xf32>
    %12 = arith.addf %9, %11 : vector<128x128xf32>
    %cst_11 = arith.constant 0.000000e+00 : f32
    %13 = vector.broadcast %cst_11 : f32 to vector<128x128xf32>
    %14 = arith.maximumf %12, %13 : vector<128x128xf32>
    %15 = tpu.transpose %14, [1, 0] : vector<128x128xf32> -> vector<128x128xf32>
    %c0_12 = arith.constant 0 : index
    %c0_13 = arith.constant 0 : index
    %16 = vector.load %arg4[%c0_12, %c0_13] : memref<1x128xf32, #tpu.memory_space<vmem>>, vector<1x128xf32>
    %cst_14 = arith.constant dense<0.000000e+00> : vector<1x128xf32>
    %17 = tpu.matmul %16, %15, %cst_14 {dimension_numbers = #tpu.dot_dimension_numbers<[1], [0], [0], [1], [0, 0, 1, 1], [], []>} : vector<1x128xf32>, vector<128x128xf32>, vector<1x128xf32> -> vector<1x128xf32>
    %c0_15 = arith.constant 0 : index
    %c0_16 = arith.constant 0 : index
    %18 = vector.load %arg7[%c0_15, %c0_16] : memref<1x1xf32, #tpu.memory_space<vmem>>, vector<1x1xf32>
    %19 = vector.broadcast %18 : vector<1x1xf32> to vector<1x128xf32>
    %20 = arith.addf %17, %19 : vector<1x128xf32>
    %21 = arith.negf %20 : vector<1x128xf32>
    %22 = math.exp %21 : vector<1x128xf32>
    %cst_17 = arith.constant 1.000000e+00 : f32
    %23 = vector.broadcast %cst_17 : f32 to vector<1x128xf32>
    %24 = arith.addf %23, %22 : vector<1x128xf32>
    %25 = arith.divf %23, %24 : vector<1x128xf32>
    %c0_18 = arith.constant 0 : index
    %c0_19 = arith.constant 0 : index
    %26 = vector.load %arg8[%c0_18, %c0_19] : memref<1x128xf32, #tpu.memory_space<vmem>>, vector<1x128xf32>
    tpu.vector_store %arg8[%c0_18, %c0_19], %25 {strides = array<i32>} : memref<1x128xf32, #tpu.memory_space<vmem>>, vector<1x128xf32>,
    return
  }
  func.func @transform_0(%arg0: i32) -> (i32, i32) {
    %c0_i32 = arith.constant 0 : i32
    %c0_i32_0 = arith.constant 0 : i32
    return %arg0, %c0_i32 : i32, i32
  }
  func.func @transform_1(%arg0: i32) -> (i32, i32) {
    %c0_i32 = arith.constant 0 : i32
    %c0_i32_0 = arith.constant 0 : i32
    %c0_i32_1 = arith.constant 0 : i32
    return %c0_i32, %c0_i32_0 : i32, i32
  }
  func.func @transform_2(%arg0: i32) -> (i32, i32) {
    %c0_i32 = arith.constant 0 : i32
    %c0_i32_0 = arith.constant 0 : i32
    %c0_i32_1 = arith.constant 0 : i32
    return %c0_i32, %c0_i32_0 : i32, i32
  }
  func.func @transform_3(%arg0: i32) -> (i32, i32) {
    %c0_i32 = arith.constant 0 : i32
    %c0_i32_0 = arith.constant 0 : i32
    %c0_i32_1 = arith.constant 0 : i32
    return %c0_i32, %c0_i32_0 : i32, i32
  }
  func.func @transform_4(%arg0: i32) -> (i32, i32) {
    %c0_i32 = arith.constant 0 : i32
    %c0_i32_0 = arith.constant 0 : i32
    %c0_i32_1 = arith.constant 0 : i32
    return %c0_i32, %c0_i32_0 : i32, i32
  }
  func.func @transform_5(%arg0: i32) -> (i32, i32) {
    %c0_i32 = arith.constant 0 : i32
    %c0_i32_0 = arith.constant 0 : i32
    %c0_i32_1 = arith.constant 0 : i32
    return %c0_i32, %c0_i32_0 : i32, i32
  }
  func.func @transform_6(%arg0: i32) -> (i32, i32) {
    %c0_i32 = arith.constant 0 : i32
    %c0_i32_0 = arith.constant 0 : i32
    %c0_i32_1 = arith.constant 0 : i32
    return %c0_i32, %c0_i32_0 : i32, i32
  }
  func.func @transform_7(%arg0: i32) -> (i32, i32) {
    %c0_i32 = arith.constant 0 : i32
    %c0_i32_0 = arith.constant 0 : i32
    return %c0_i32, %arg0 : i32, i32
  }
}

</mosaic_0001>

<llo_original>
// kernel: tpu_custom_call.1
$region0: #{tpu_custom_call.1}
  #allocation0 [shape = 'u32[]', space=smem, size = 0x4, offset = 0x4, fixed_abs, tag = 'smem constant byte address 0x4 - core index']
  #allocation1 [shape = 'u32[144,128]{1,0:T(1,128)}', space=vmem, size = 0x12000, scoped, tag = 'internal scratch']
  #allocation2 [shape = 'f32[1,1]{1,0:T(1,128)S(1)}', space=vmem, size = 0x200, scoped, tag = 'scoped memory for tpu_custom_call.1']
  %s0 = inlined_call_operand.vmem [shape: f32[128,8], index: 0, kind: input, shape index: {}]
  %s1 = inlined_call_operand.vmem [shape: f32[8,128], index: 1, kind: input, shape index: {}]
  %s2 = inlined_call_operand.vmem [shape: f32[128,128], index: 2, kind: input, shape index: {}]
  %s3 = inlined_call_operand.vmem [shape: f32[1,128], index: 3, kind: input, shape index: {}]
  %s4 = inlined_call_operand.vmem [shape: f32[1,128], index: 4, kind: input, shape index: {}]
  %s5 = inlined_call_operand.vmem [shape: f32[1,128], index: 5, kind: input, shape index: {}]
  %s6 = inlined_call_operand.<no memory space> [shape: f32[1,1], index: 6, kind: input, shape index: {}]
  %s7 = inlined_call_operand.hbm [shape: f32[1,128], index: 7, kind: output, shape index: {}]
  %s8 = sld [smem:[#allocation0]]
  $region38: #{tpu_custom_call.1} parent=0
    _
  %s10 = ssub.s32 1, %s8
  %s11 = scalar_select 0, %s10, %s8
  %v12 = vstv %s6
  %13 = vst [vmem:[#allocation2] sm:$0x1] %v12
  $region1: #{tpu_custom_call.1} parent=0
    #allocation3 [shape = 'u8[512]{0}', space=vmem, size = 0x400, scoped, tag = 'output window, operand 0, single buffered']
    #allocation4 [shape = 's32[1]{0}', space=sflag, size = 0x4, scoped, tag = 'scoped memory for tpu_custom_call.1']
    %14 = vsyncpa [#allocation4], 0
    // Predicated region
    $region2: #{tpu_custom_call.1} parent=1 // pred_check
      _
    $region3: #{tpu_custom_call.1} parent=1 // pred_check_branch
      %16 = sbr.rel (0) target = $region5
    $region4: #{tpu_custom_call.1} parent=1 // pred_region
      _
    $region5: #{tpu_custom_call.1} parent=1 // pred_fallthru
      _
    // Predicated region
    $region6: #{tpu_custom_call.1} parent=1 // pred_check
      _
    $region7: #{tpu_custom_call.1} parent=1 // pred_check_branch
      %18 = sbr.rel (0) target = $region9
    $region8: #{tpu_custom_call.1} parent=1 // pred_region
      _
    $region9: #{tpu_custom_call.1} parent=1 // pred_fallthru
      _
    // Predicated region
    $region10: #{tpu_custom_call.1} parent=1 // pred_check
      _
    $region11: #{tpu_custom_call.1} parent=1 // pred_check_branch
      %20 = sbr.rel (0) target = $region13
    $region12: #{tpu_custom_call.1} parent=1 // pred_region
      _
    $region13: #{tpu_custom_call.1} parent=1 // pred_fallthru
      _
    // Predicated region
    $region14: #{tpu_custom_call.1} parent=1 // pred_check
      _
    $region15: #{tpu_custom_call.1} parent=1 // pred_check_branch
      %22 = sbr.rel (0) target = $region17
    $region16: #{tpu_custom_call.1} parent=1 // pred_region
      _
    $region17: #{tpu_custom_call.1} parent=1 // pred_fallthru
      _
    // Predicated region
    $region18: #{tpu_custom_call.1} parent=1 // pred_check
      _
    $region19: #{tpu_custom_call.1} parent=1 // pred_check_branch
      %24 = sbr.rel (0) target = $region21
    $region20: #{tpu_custom_call.1} parent=1 // pred_region
      _
    $region21: #{tpu_custom_call.1} parent=1 // pred_fallthru
      _
    // Predicated region
    $region22: #{tpu_custom_call.1} parent=1 // pred_check
      _
    $region23: #{tpu_custom_call.1} parent=1 // pred_check_branch
      %26 = sbr.rel (0) target = $region25
    $region24: #{tpu_custom_call.1} parent=1 // pred_region
      _
    $region25: #{tpu_custom_call.1} parent=1 // pred_fallthru
      _
    // Predicated region
    $region26: #{tpu_custom_call.1} parent=1 // pred_check
      _
    $region27: #{tpu_custom_call.1} parent=1 // pred_check_branch
      %28 = sbr.rel (0) target = $region29
    $region28: #{tpu_custom_call.1} parent=1 // pred_region
      _
    $region29: #{tpu_custom_call.1} parent=1 // pred_fallthru
      _
    %v29 = vld [vmem:[%s0] sm:$0xff]
    %v30 = vld [vmem:[%s0 + $0x8] sm:$0xff]
    %v31 = vld [vmem:[%s0 + $0x10] sm:$0xff]
    %v32 = vld [vmem:[%s0 + $0x18] sm:$0xff]
    %v33 = vld [vmem:[%s0 + $0x20] sm:$0xff]
    %v34 = vld [vmem:[%s0 + $0x28] sm:$0xff]
    %v35 = vld [vmem:[%s0 + $0x30] sm:$0xff]
    %v36 = vld [vmem:[%s0 + $0x38] sm:$0xff]
    %v37 = vld [vmem:[%s0 + $0x40] sm:$0xff]
    %v38 = vld [vmem:[%s0 + $0x48] sm:$0xff]
    %v39 = vld [vmem:[%s0 + $0x50] sm:$0xff]
    %v40 = vld [vmem:[%s0 + $0x58] sm:$0xff]
    %v41 = vld [vmem:[%s0 + $0x60] sm:$0xff]
    %v42 = vld [vmem:[%s0 + $0x68] sm:$0xff]
    %v43 = vld [vmem:[%s0 + $0x70] sm:$0xff]
    %v44 = vld [vmem:[%s0 + $0x78] sm:$0xff]
    %v45 = vld [vmem:[%s1] sm:$0xff]
    %v46 = vld [vmem:[%s4] sm:$0x1]
    %v48 = vlaneseq
    %v49 = vshrl.u32 %v48, 7
    %v50 = vsub.s32 0, %v49
    %v51 = vrot.slane %v46, %v50
    %vm53 = vcmask 64512
    %v55 = vsel %vm53, %v29, 0
    %v58 = vsel %vm53, %v30, 0
    %v61 = vsel %vm53, %v31, 0
    %v64 = vsel %vm53, %v32, 0
    %v67 = vsel %vm53, %v33, 0
    %v70 = vsel %vm53, %v34, 0
    %v73 = vsel %vm53, %v35, 0
    %v76 = vsel %vm53, %v36, 0
    %v79 = vsel %vm53, %v37, 0
    %v82 = vsel %vm53, %v38, 0
    %v85 = vsel %vm53, %v39, 0
    %v88 = vsel %vm53, %v40, 0
    %v91 = vsel %vm53, %v41, 0
    %v94 = vsel %vm53, %v42, 0
    %v97 = vsel %vm53, %v43, 0
    %v100 = vsel %vm53, %v44, 0
    %102 = vmatprep.subr.mxu0 0.0
    %103 = vmatpush1.msra.mxu0 %v45
    %104 = vmatprep.subr.mxu0 0.0
    %105 = vmatpush1.msra.mxu0 0.0
    %106 = vmatprep.subr.mxu0 0.0
    %107 = vmatpush1.msra.mxu0 0.0
    %108 = vmatprep.subr.mxu0 0.0
    %109 = vmatpush1.msra.mxu0 0.0
    %110 = vmatprep.subr.mxu0 0.0
    %111 = vmatpush1.msra.mxu0 0.0
    %112 = vmatprep.subr.mxu0 0.0
    %113 = vmatpush1.msra.mxu0 0.0
    %114 = vmatprep.subr.mxu0 0.0
    %115 = vmatpush1.msra.mxu0 0.0
    %116 = vmatprep.subr.mxu0 0.0
    %117 = vmatpush1.msra.mxu0 0.0
    %118 = vmatprep.subr.mxu0 0.0
    %119 = vmatpush1.msra.mxu0 0.0
    %120 = vmatprep.subr.mxu0 0.0
    %121 = vmatpush1.msra.mxu0 0.0
    %122 = vmatprep.subr.mxu0 0.0
    %123 = vmatpush1.msra.mxu0 0.0
    %124 = vmatprep.subr.mxu0 0.0
    %125 = vmatpush1.msra.mxu0 0.0
    %126 = vmatprep.subr.mxu0 0.0
    %127 = vmatpush1.msra.mxu0 0.0
    %128 = vmatprep.subr.mxu0 0.0
    %129 = vmatpush1.msra.mxu0 0.0
    %130 = vmatprep.subr.mxu0 0.0
    %131 = vmatpush1.msra.mxu0 0.0
    %132 = vmatprep.subr.mxu0 0.0
    %133 = vmatpush1.msra.mxu0 0.0
    %134 = vmatprep.subr.mxu0 0.0
    %135 = vmatpush1.msra.mxu0 0.0
    %136 = vmatprep.subr.mxu0 0.0
    %137 = vmatpush1.msra.mxu0 0.0
    %138 = vmatprep.subr.mxu0 0.0
    %139 = vmatpush1.msra.mxu0 0.0
    %140 = vmatprep.subr.mxu0 0.0
    %141 = vmatpush1.msra.mxu0 0.0
    %142 = vmatprep.subr.mxu0 0.0
    %143 = vmatpush1.msra.mxu0 0.0
    %144 = vmatprep.subr.mxu0 0.0
    %145 = vmatpush1.msra.mxu0 0.0
    %146 = vmatprep.subr.mxu0 0.0
    %147 = vmatpush1.msra.mxu0 0.0
    %148 = vmatprep.subr.mxu0 0.0
    %149 = vmatpush1.msra.mxu0 0.0
    %150 = vmatprep.subr.mxu0 0.0
    %151 = vmatpush1.msra.mxu0 0.0
    %152 = vmatprep.subr.mxu0 0.0
    %153 = vmatpush1.msra.mxu0 0.0
    %154 = vmatprep.subr.mxu0 0.0
    %155 = vmatpush1.msra.mxu0 0.0
    %156 = vmatprep.subr.mxu0 0.0
    %157 = vmatpush1.msra.mxu0 0.0
    %158 = vmatprep.subr.mxu0 0.0
    %159 = vmatpush1.msra.mxu0 0.0
    %160 = vmatprep.subr.mxu0 0.0
    %161 = vmatpush1.msra.mxu0 0.0
    %162 = vmatprep.subr.mxu0 0.0
    %163 = vmatpush1.msra.mxu0 0.0
    %164 = vmatprep.subr.mxu0 0.0
    %165 = vmatpush1.msra.mxu0 0.0
    %166 = vmatprep.mubr.f32.mxu0 0.0
    %167 = vmatmul.mubr.f32.gmra.mrb[0].mxu0 %v55
    %v168 = vpop.f32.mrb[0].mxu0
    %v169 = vadd.f32 %v51, %v168
    %v170 = vpop.f32.mrb[0].mxu0
    %171 = vmatprep.mubr.f32.mxu0 0.0
    %172 = vmatmul.mubr.f32.gmra.mrb[0].mxu0 %v58
    %v173 = vpop.f32.mrb[0].mxu0
    %v174 = vadd.f32 %v51, %v173
    %v175 = vpop.f32.mrb[0].mxu0
    %176 = vmatprep.mubr.f32.mxu0 0.0
    %177 = vmatmul.mubr.f32.gmra.mrb[0].mxu0 %v61
    %v178 = vpop.f32.mrb[0].mxu0
    %v179 = vadd.f32 %v51, %v178
    %v180 = vpop.f32.mrb[0].mxu0
    %181 = vmatprep.mubr.f32.mxu0 0.0
    %182 = vmatmul.mubr.f32.gmra.mrb[0].mxu0 %v64
    %v183 = vpop.f32.mrb[0].mxu0
    %v184 = vadd.f32 %v51, %v183
    %v185 = vpop.f32.mrb[0].mxu0
    %186 = vmatprep.mubr.f32.mxu0 0.0
    %187 = vmatmul.mubr.f32.gmra.mrb[0].mxu0 %v67
    %v188 = vpop.f32.mrb[0].mxu0
    %v189 = vadd.f32 %v51, %v188
    %v190 = vpop.f32.mrb[0].mxu0
    %191 = vmatprep.mubr.f32.mxu0 0.0
    %192 = vmatmul.mubr.f32.gmra.mrb[0].mxu0 %v70
    %v193 = vpop.f32.mrb[0].mxu0
    %v194 = vadd.f32 %v51, %v193
    %v195 = vpop.f32.mrb[0].mxu0
    %196 = vmatprep.mubr.f32.mxu0 0.0
    %197 = vmatmul.mubr.f32.gmra.mrb[0].mxu0 %v73
    %v198 = vpop.f32.mrb[0].mxu0
    %v199 = vadd.f32 %v51, %v198
    %v200 = vpop.f32.mrb[0].mxu0
    %201 = vmatprep.mubr.f32.mxu0 0.0
    %202 = vmatmul.mubr.f32.gmra.mrb[0].mxu0 %v76
    %v203 = vpop.f32.mrb[0].mxu0
    %v204 = vadd.f32 %v51, %v203
    %v205 = vpop.f32.mrb[0].mxu0
    %206 = vmatprep.mubr.f32.mxu0 0.0
    %207 = vmatmul.mubr.f32.gmra.mrb[0].mxu0 %v79
    %v208 = vpop.f32.mrb[0].mxu0
    %v209 = vadd.f32 %v51, %v208
    %v210 = vpop.f32.mrb[0].mxu0
    %211 = vmatprep.mubr.f32.mxu0 0.0
    %212 = vmatmul.mubr.f32.gmra.mrb[0].mxu0 %v82
    %v213 = vpop.f32.mrb[0].mxu0
    %v214 = vadd.f32 %v51, %v213
    %v215 = vpop.f32.mrb[0].mxu0
    %216 = vmatprep.mubr.f32.mxu0 0.0
    %217 = vmatmul.mubr.f32.gmra.mrb[0].mxu0 %v85
    %v218 = vpop.f32.mrb[0].mxu0
    %v219 = vadd.f32 %v51, %v218
    %v220 = vpop.f32.mrb[0].mxu0
    %221 = vmatprep.mubr.f32.mxu0 0.0
    %222 = vmatmul.mubr.f32.gmra.mrb[0].mxu0 %v88
    %v223 = vpop.f32.mrb[0].mxu0
    %v224 = vadd.f32 %v51, %v223
    %v225 = vpop.f32.mrb[0].mxu0
    %226 = vmatprep.mubr.f32.mxu0 0.0
    %227 = vmatmul.mubr.f32.gmra.mrb[0].mxu0 %v91
    %v228 = vpop.f32.mrb[0].mxu0
    %v229 = vadd.f32 %v51, %v228
    %v230 = vpop.f32.mrb[0].mxu0
    %231 = vmatprep.mubr.f32.mxu0 0.0
    %232 = vmatmul.mubr.f32.gmra.mrb[0].mxu0 %v94
    %v233 = vpop.f32.mrb[0].mxu0
    %v234 = vadd.f32 %v51, %v233
    %v235 = vpop.f32.mrb[0].mxu0
    %236 = vmatprep.mubr.f32.mxu0 0.0
    %237 = vmatmul.mubr.f32.gmra.mrb[0].mxu0 %v97
    %v238 = vpop.f32.mrb[0].mxu0
    %v239 = vadd.f32 %v51, %v238
    %v240 = vpop.f32.mrb[0].mxu0
    %241 = vmatprep.mubr.f32.mxu0 0.0
    %242 = vmatmul.mubr.f32.gmra.mrb[0].mxu0 %v100
    %v243 = vpop.f32.mrb[0].mxu0
    %v244 = vadd.f32 %v51, %v243
    %v245 = vpop.f32.mrb[0].mxu0
    %246 = vdwg.mxu0
    %v247 = vmax.f32 %v169, 0.0
    %v248 = vmax.f32 %v174, 0.0
    %v249 = vmax.f32 %v179, 0.0
    %v250 = vmax.f32 %v184, 0.0
    %v251 = vmax.f32 %v189, 0.0
    %v252 = vmax.f32 %v194, 0.0
    %v253 = vmax.f32 %v199, 0.0
    %v254 = vmax.f32 %v204, 0.0
    %v255 = vmax.f32 %v209, 0.0
    %v256 = vmax.f32 %v214, 0.0
    %v257 = vmax.f32 %v219, 0.0
    %v258 = vmax.f32 %v224, 0.0
    %v259 = vmax.f32 %v229, 0.0
    %v260 = vmax.f32 %v234, 0.0
    %v261 = vmax.f32 %v239, 0.0
    %v262 = vmax.f32 %v244, 0.0
    %v263 = vld [vmem:[%s2] sm:$0xff]
    %v264 = vld [vmem:[%s2 + $0x8] sm:$0xff]
    %v265 = vld [vmem:[%s2 + $0x10] sm:$0xff]
    %v266 = vld [vmem:[%s2 + $0x18] sm:$0xff]
    %v267 = vld [vmem:[%s2 + $0x20] sm:$0xff]
    %v268 = vld [vmem:[%s2 + $0x28] sm:$0xff]
    %v269 = vld [vmem:[%s2 + $0x30] sm:$0xff]
    %v270 = vld [vmem:[%s2 + $0x38] sm:$0xff]
    %v271 = vld [vmem:[%s2 + $0x40] sm:$0xff]
    %v272 = vld [vmem:[%s2 + $0x48] sm:$0xff]
    %v273 = vld [vmem:[%s2 + $0x50] sm:$0xff]
    %v274 = vld [vmem:[%s2 + $0x58] sm:$0xff]
    %v275 = vld [vmem:[%s2 + $0x60] sm:$0xff]
    %v276 = vld [vmem:[%s2 + $0x68] sm:$0xff]
    %v277 = vld [vmem:[%s2 + $0x70] sm:$0xff]
    %v278 = vld [vmem:[%s2 + $0x78] sm:$0xff]
    %v279 = vld [vmem:[%s5] sm:$0x1]
    %v281 = vlaneseq
    %v282 = vshrl.u32 %v281, 7
    %v283 = vsub.s32 0, %v282
    %v284 = vrot.slane %v279, %v283
    %286 = vmatprep.subr.mxu0 0.0
    %287 = vmatpush1.msra.mxu0 %v263
    %288 = vmatprep.subr.mxu0 0.0
    %289 = vmatpush1.msra.mxu0 %v264
    %290 = vmatprep.subr.mxu0 0.0
    %291 = vmatpush1.msra.mxu0 %v265
    %292 = vmatprep.subr.mxu0 0.0
    %293 = vmatpush1.msra.mxu0 %v266
    %294 = vmatprep.subr.mxu0 0.0
    %295 = vmatpush1.msra.mxu0 %v267
    %296 = vmatprep.subr.mxu0 0.0
    %297 = vmatpush1.msra.mxu0 %v268
    %298 = vmatprep.subr.mxu0 0.0
    %299 = vmatpush1.msra.mxu0 %v269
    %300 = vmatprep.subr.mxu0 0.0
    %301 = vmatpush1.msra.mxu0 %v270
    %302 = vmatprep.subr.mxu0 0.0
    %303 = vmatpush1.msra.mxu0 %v271
    %304 = vmatprep.subr.mxu0 0.0
    %305 = vmatpush1.msra.mxu0 %v272
    %306 = vmatprep.subr.mxu0 0.0
    %307 = vmatpush1.msra.mxu0 %v273
    %308 = vmatprep.subr.mxu0 0.0
    %309 = vmatpush1.msra.mxu0 %v274
    %310 = vmatprep.subr.mxu0 0.0
    %311 = vmatpush1.msra.mxu0 %v275
    %312 = vmatprep.subr.mxu0 0.0
    %313 = vmatpush1.msra.mxu0 %v276
    %314 = vmatprep.subr.mxu0 0.0
    %315 = vmatpush1.msra.mxu0 %v277
    %316 = vmatprep.subr.mxu0 0.0
    %317 = vmatpush1.msra.mxu0 %v278
    %318 = vmatprep.subr.mxu0 0.0
    %319 = vmatpush1.msra.mxu0 0.0
    %320 = vmatprep.subr.mxu0 0.0
    %321 = vmatpush1.msra.mxu0 0.0
    %322 = vmatprep.subr.mxu0 0.0
    %323 = vmatpush1.msra.mxu0 0.0
    %324 = vmatprep.subr.mxu0 0.0
    %325 = vmatpush1.msra.mxu0 0.0
    %326 = vmatprep.subr.mxu0 0.0
    %327 = vmatpush1.msra.mxu0 0.0
    %328 = vmatprep.subr.mxu0 0.0
    %329 = vmatpush1.msra.mxu0 0.0
    %330 = vmatprep.subr.mxu0 0.0
    %331 = vmatpush1.msra.mxu0 0.0
    %332 = vmatprep.subr.mxu0 0.0
    %333 = vmatpush1.msra.mxu0 0.0
    %334 = vmatprep.subr.mxu0 0.0
    %335 = vmatpush1.msra.mxu0 0.0
    %336 = vmatprep.subr.mxu0 0.0
    %337 = vmatpush1.msra.mxu0 0.0
    %338 = vmatprep.subr.mxu0 0.0
    %339 = vmatpush1.msra.mxu0 0.0
    %340 = vmatprep.subr.mxu0 0.0
    %341 = vmatpush1.msra.mxu0 0.0
    %342 = vmatprep.subr.mxu0 0.0
    %343 = vmatpush1.msra.mxu0 0.0
    %344 = vmatprep.subr.mxu0 0.0
    %345 = vmatpush1.msra.mxu0 0.0
    %346 = vmatprep.subr.mxu0 0.0
    %347 = vmatpush1.msra.mxu0 0.0
    %348 = vmatprep.subr.mxu0 0.0
    %349 = vmatpush1.msra.mxu0 0.0
    %350 = vmatprep.mubr.f32.mxu0 0.0
    %351 = vmatmul.mubr.f32.gmra.mrb[0].mxu0 %v247
    %v352 = vpop.f32.mrb[0].mxu0
    %v353 = vadd.f32 %v284, %v352
    %v354 = vpop.f32.mrb[0].mxu0
    %355 = vmatprep.mubr.f32.mxu0 0.0
    %356 = vmatmul.mubr.f32.gmra.mrb[0].mxu0 %v248
    %v357 = vpop.f32.mrb[0].mxu0
    %v358 = vadd.f32 %v284, %v357
    %v359 = vpop.f32.mrb[0].mxu0
    %360 = vmatprep.mubr.f32.mxu0 0.0
    %361 = vmatmul.mubr.f32.gmra.mrb[0].mxu0 %v249
    %v362 = vpop.f32.mrb[0].mxu0
    %v363 = vadd.f32 %v284, %v362
    %v364 = vpop.f32.mrb[0].mxu0
    %365 = vmatprep.mubr.f32.mxu0 0.0
    %366 = vmatmul.mubr.f32.gmra.mrb[0].mxu0 %v250
    %v367 = vpop.f32.mrb[0].mxu0
    %v368 = vadd.f32 %v284, %v367
    %v369 = vpop.f32.mrb[0].mxu0
    %370 = vmatprep.mubr.f32.mxu0 0.0
    %371 = vmatmul.mubr.f32.gmra.mrb[0].mxu0 %v251
    %v372 = vpop.f32.mrb[0].mxu0
    %v373 = vadd.f32 %v284, %v372
    %v374 = vpop.f32.mrb[0].mxu0
    %375 = vmatprep.mubr.f32.mxu0 0.0
    %376 = vmatmul.mubr.f32.gmra.mrb[0].mxu0 %v252
    %v377 = vpop.f32.mrb[0].mxu0
    %v378 = vadd.f32 %v284, %v377
    %v379 = vpop.f32.mrb[0].mxu0
    %380 = vmatprep.mubr.f32.mxu0 0.0
    %381 = vmatmul.mubr.f32.gmra.mrb[0].mxu0 %v253
    %v382 = vpop.f32.mrb[0].mxu0
    %v383 = vadd.f32 %v284, %v382
    %v384 = vpop.f32.mrb[0].mxu0
    %385 = vmatprep.mubr.f32.mxu0 0.0
    %386 = vmatmul.mubr.f32.gmra.mrb[0].mxu0 %v254
    %v387 = vpop.f32.mrb[0].mxu0
    %v388 = vadd.f32 %v284, %v387
    %v389 = vpop.f32.mrb[0].mxu0
    %390 = vmatprep.mubr.f32.mxu0 0.0
    %391 = vmatmul.mubr.f32.gmra.mrb[0].mxu0 %v255
    %v392 = vpop.f32.mrb[0].mxu0
    %v393 = vadd.f32 %v284, %v392
    %v394 = vpop.f32.mrb[0].mxu0
    %395 = vmatprep.mubr.f32.mxu0 0.0
    %396 = vmatmul.mubr.f32.gmra.mrb[0].mxu0 %v256
    %v397 = vpop.f32.mrb[0].mxu0
    %v398 = vadd.f32 %v284, %v397
    %v399 = vpop.f32.mrb[0].mxu0
    %400 = vmatprep.mubr.f32.mxu0 0.0
    %401 = vmatmul.mubr.f32.gmra.mrb[0].mxu0 %v257
    %v402 = vpop.f32.mrb[0].mxu0
    %v403 = vadd.f32 %v284, %v402
    %v404 = vpop.f32.mrb[0].mxu0
    %405 = vmatprep.mubr.f32.mxu0 0.0
    %406 = vmatmul.mubr.f32.gmra.mrb[0].mxu0 %v258
    %v407 = vpop.f32.mrb[0].mxu0
    %v408 = vadd.f32 %v284, %v407
    %v409 = vpop.f32.mrb[0].mxu0
    %410 = vmatprep.mubr.f32.mxu0 0.0
    %411 = vmatmul.mubr.f32.gmra.mrb[0].mxu0 %v259
    %v412 = vpop.f32.mrb[0].mxu0
    %v413 = vadd.f32 %v284, %v412
    %v414 = vpop.f32.mrb[0].mxu0
    %415 = vmatprep.mubr.f32.mxu0 0.0
    %416 = vmatmul.mubr.f32.gmra.mrb[0].mxu0 %v260
    %v417 = vpop.f32.mrb[0].mxu0
    %v418 = vadd.f32 %v284, %v417
    %v419 = vpop.f32.mrb[0].mxu0
    %420 = vmatprep.mubr.f32.mxu0 0.0
    %421 = vmatmul.mubr.f32.gmra.mrb[0].mxu0 %v261
    %v422 = vpop.f32.mrb[0].mxu0
    %v423 = vadd.f32 %v284, %v422
    %v424 = vpop.f32.mrb[0].mxu0
    %425 = vmatprep.mubr.f32.mxu0 0.0
    %426 = vmatmul.mubr.f32.gmra.mrb[0].mxu0 %v262
    %v427 = vpop.f32.mrb[0].mxu0
    %v428 = vadd.f32 %v284, %v427
    %v429 = vpop.f32.mrb[0].mxu0
    %430 = vdwg.mxu0
    %v431 = vmax.f32 %v353, 0.0
    %v432 = vmax.f32 %v358, 0.0
    %v433 = vmax.f32 %v363, 0.0
    %v434 = vmax.f32 %v368, 0.0
    %v435 = vmax.f32 %v373, 0.0
    %v436 = vmax.f32 %v378, 0.0
    %v437 = vmax.f32 %v383, 0.0
    %v438 = vmax.f32 %v388, 0.0
    %v439 = vmax.f32 %v393, 0.0
    %v440 = vmax.f32 %v398, 0.0
    %v441 = vmax.f32 %v403, 0.0
    %v442 = vmax.f32 %v408, 0.0
    %v443 = vmax.f32 %v413, 0.0
    %v444 = vmax.f32 %v418, 0.0
    %v445 = vmax.f32 %v423, 0.0
    %v446 = vmax.f32 %v428, 0.0
    %v447 = vld [vmem:[%s3] sm:$0x1]
    %v448 = vld [vmem:[#allocation2] sm:$0x1]
    %450 = vset.pattern.permute.xlu0 0
    %451 = vperm.xlu0 %450, %v448
    %v452 = vpop.permute.xlu0 %451
    %v454 = vlaneseq
    %v455 = vshrl.u32 %v454, 7
    %v456 = vsub.s32 0, %v455
    %v457 = vrot.slane %v452, %v456
    %458 = vmatprep.subr.mxu0 0.0
    %459 = vmatpush1.xpose.msra.mxu0 %v431
    %460 = vmatprep.subr.mxu0 0.0
    %461 = vmatpush1.xpose.msra.mxu0 %v432
    %462 = vmatprep.subr.mxu0 0.0
    %463 = vmatpush1.xpose.msra.mxu0 %v433
    %464 = vmatprep.subr.mxu0 0.0
    %465 = vmatpush1.xpose.msra.mxu0 %v434
    %466 = vmatprep.subr.mxu0 0.0
    %467 = vmatpush1.xpose.msra.mxu0 %v435
    %468 = vmatprep.subr.mxu0 0.0
    %469 = vmatpush1.xpose.msra.mxu0 %v436
    %470 = vmatprep.subr.mxu0 0.0
    %471 = vmatpush1.xpose.msra.mxu0 %v437
    %472 = vmatprep.subr.mxu0 0.0
    %473 = vmatpush1.xpose.msra.mxu0 %v438
    %474 = vmatprep.subr.mxu0 0.0
    %475 = vmatpush1.xpose.msra.mxu0 %v439
    %476 = vmatprep.subr.mxu0 0.0
    %477 = vmatpush1.xpose.msra.mxu0 %v440
    %478 = vmatprep.subr.mxu0 0.0
    %479 = vmatpush1.xpose.msra.mxu0 %v441
    %480 = vmatprep.subr.mxu0 0.0
    %481 = vmatpush1.xpose.msra.mxu0 %v442
    %482 = vmatprep.subr.mxu0 0.0
    %483 = vmatpush1.xpose.msra.mxu0 %v443
    %484 = vmatprep.subr.mxu0 0.0
    %485 = vmatpush1.xpose.msra.mxu0 %v444
    %486 = vmatprep.subr.mxu0 0.0
    %487 = vmatpush1.xpose.msra.mxu0 %v445
    %488 = vmatprep.subr.mxu0 0.0
    %489 = vmatpush1.xpose.msra.mxu0 %v446
    %490 = vmatprep.subr.mxu0 0.0
    %491 = vmatpush1.xpose.msra.mxu0 0.0
    %492 = vmatprep.subr.mxu0 0.0
    %493 = vmatpush1.xpose.msra.mxu0 0.0
    %494 = vmatprep.subr.mxu0 0.0
    %495 = vmatpush1.xpose.msra.mxu0 0.0
    %496 = vmatprep.subr.mxu0 0.0
    %497 = vmatpush1.xpose.msra.mxu0 0.0
    %498 = vmatprep.subr.mxu0 0.0
    %499 = vmatpush1.xpose.msra.mxu0 0.0
    %500 = vmatprep.subr.mxu0 0.0
    %501 = vmatpush1.xpose.msra.mxu0 0.0
    %502 = vmatprep.subr.mxu0 0.0
    %503 = vmatpush1.xpose.msra.mxu0 0.0
    %504 = vmatprep.subr.mxu0 0.0
    %505 = vmatpush1.xpose.msra.mxu0 0.0
    %506 = vmatprep.subr.mxu0 0.0
    %507 = vmatpush1.xpose.msra.mxu0 0.0
    %508 = vmatprep.subr.mxu0 0.0
    %509 = vmatpush1.xpose.msra.mxu0 0.0
    %510 = vmatprep.subr.mxu0 0.0
    %511 = vmatpush1.xpose.msra.mxu0 0.0
    %512 = vmatprep.subr.mxu0 0.0
    %513 = vmatpush1.xpose.msra.mxu0 0.0
    %514 = vmatprep.subr.mxu0 0.0
    %515 = vmatpush1.xpose.msra.mxu0 0.0
    %516 = vmatprep.subr.mxu0 0.0
    %517 = vmatpush1.xpose.msra.mxu0 0.0
    %518 = vmatprep.subr.mxu0 0.0
    %519 = vmatpush1.xpose.msra.mxu0 0.0
    %520 = vmatprep.subr.mxu0 0.0
    %521 = vmatpush1.xpose.msra.mxu0 0.0
    %522 = vmatprep.mubr.f32.mxu0 0.0
    %523 = vmatmul.mubr.f32.gmra.mrb[0].mxu0 %v447
    %v524 = vpop.f32.mrb[0].mxu0
    %v525 = vadd.f32 %v457, %v524
    %v526 = vpop.f32.mrb[0].mxu0
    %527 = vdwg.mxu0
    %v528 = vxor.u32 %v525, 2147483648
    %v529 = vmul.f32 %v528, 1.442695
    %v530 = vpow.pop %v529
    %v531 = vadd.f32 %v530, 1.0
    %v532 = vrcp.pop %v531
    %v533 = vmul.f32 1.0, %v532
    %534 = vst [vmem:[#allocation3] sm:$0x1] %v533
    // Predicated region
    $region30: #{tpu_custom_call.1} parent=1 // pred_check
      _
    $region31: #{tpu_custom_call.1} parent=1 // pred_check_branch
      %536 = sbr.rel (0) target = $region33
    $region32: #{tpu_custom_call.1} parent=1 // pred_region
      %s538 = ssub.s32 16, 16
      %539 = vsyncadd [#allocation4], %s538
      %s541 = sshll.u32 [#allocation3], 4
      %s542 = int_to_ptr.vmem [resolvable:$true] %s541
      %544 = dma.vmem_to_hbm [thread:$0]  %s542, 16, %s7, [#allocation4]
    $region33: #{tpu_custom_call.1} parent=1 // pred_fallthru
      _
    // Predicated region
    $region34: #{tpu_custom_call.1} parent=1 // pred_check
      _
    $region35: #{tpu_custom_call.1} parent=1 // pred_check_branch
      %546 = sbr.rel (0) target = $region37
    $region36: #{tpu_custom_call.1} parent=1 // pred_region
      %547 = dma.done [#allocation4], 16
    $region37: #{tpu_custom_call.1} parent=1 // pred_fallthru
      _
    %548 = vsyncpa [#allocation4], 1

</llo_original>
